<compile_context>
chip_gen: v6e
topology: v6e:2x2x1
jax: 0.10.0
libtpu: 0.0.40
codegen_flags: <defaults>
</compile_context>

<pallas_src>
import math

import jax
import jax.numpy as jnp
from jax import lax
from jax.experimental import pallas as pl
from jax.experimental.pallas import tpu as pltpu

NEG_SLOPE = 0.01                 # MONAI DynUNet leakyrelu negative_slope
IN_EPS = 1e-5                    # InstanceNorm3d eps
LANE = 128
SUB = 8
# Conservative cap that fits v7x (64 MiB physical); raise toward ~96 MiB and use
# larger S-tiles on v5e/v6e (128 MiB VMEM) for big spatial extents.
VMEM_LIMIT = 48 * 1024 * 1024


def _ceil_to(x, m):
    return (x + m - 1) // m * m


def _pad_axis(a, axis, new_size):
    pad = new_size - a.shape[axis]
    if pad <= 0:
        return a
    widths = [(0, 0)] * a.ndim
    widths[axis] = (0, pad)
    return jnp.pad(a, widths)


def _s_tiling(S):
    """S-tile size (multiple of 8, <=512) and padded extent."""
    tS = 512 if S >= 512 else _ceil_to(S, SUB)
    S_pad = _ceil_to(S, tS)
    return tS, S_pad


# ---------------------------------------------------------------------------
# Kernel A: matmul + bias, single resident K block (used for the transp conv)
# ---------------------------------------------------------------------------
def matmul_bias(x, w, b, out_dtype=jnp.bfloat16):
    """y[n] = x[n] @ w + b.   x: (N,S,K), w: (K,M), b: (M,), M % 128 == 0."""
    N, S, K = x.shape
    M = w.shape[1]
    assert M % LANE == 0
    K_pad = _ceil_to(K, LANE)
    tS, S_pad = _s_tiling(S)
    nS = S_pad // tS

    xb = _pad_axis(_pad_axis(x.astype(jnp.bfloat16), 2, K_pad), 1, S_pad)
    wb = _pad_axis(w.astype(jnp.bfloat16), 0, K_pad)
    bb = b.astype(jnp.float32).reshape(1, M)

    def kernel(x_ref, w_ref, b_ref, o_ref):
        o_ref[0] = (jnp.dot(x_ref[0], w_ref[...],
                            preferred_element_type=jnp.float32)
                    + b_ref[...]).astype(o_ref.dtype)

    y = pl.pallas_call(
        kernel,
        out_shape=jax.ShapeDtypeStruct((N, S_pad, M), out_dtype),
        grid=(N, nS),
        in_specs=[
            pl.BlockSpec((1, tS, K_pad), lambda n, s: (n, s, 0)),
            pl.BlockSpec((K_pad, M), lambda n, s: (0, 0)),      # resident weight
            pl.BlockSpec((1, M), lambda n, s: (0, 0)),
        ],
        out_specs=pl.BlockSpec((1, tS, M), lambda n, s: (n, s, 0)),
        compiler_params=pltpu.CompilerParams(
            dimension_semantics=("parallel", "parallel"),
            vmem_limit_bytes=VMEM_LIMIT),
    )(xb, wb, bb)
    return y[:, :S]


# ---------------------------------------------------------------------------
# Kernel B: conv-as-matmul pass-1 (emits per-tile sum/sumsq for InstanceNorm)
#           + pass-2 tiled normalize + LeakyReLU (+ optional fused 1x1x1 head)
# ---------------------------------------------------------------------------
def _conv_pass1(x_col, w, b):
    """y = x_col @ w + b (single K block) and per-S-tile (sum, sumsq) stats."""
    N, S, K = x_col.shape
    M = w.shape[1]
    assert M % LANE == 0
    K_pad = _ceil_to(K, LANE)
    tS, S_pad = _s_tiling(S)
    nS = S_pad // tS

    xb = _pad_axis(_pad_axis(x_col.astype(jnp.bfloat16), 2, K_pad), 1, S_pad)
    wb = _pad_axis(w.astype(jnp.bfloat16), 0, K_pad)
    bb = b.astype(jnp.float32).reshape(1, M)

    def kernel(x_ref, w_ref, b_ref, y_ref, st_ref):
        y = (jnp.dot(x_ref[0], w_ref[...], preferred_element_type=jnp.float32)
             + b_ref[...])                                        # (tS, M) f32
        y_ref[0] = y.astype(y_ref.dtype)
        s1 = jnp.sum(y, axis=0, keepdims=True)                    # (1, M)
        s2 = jnp.sum(y * y, axis=0, keepdims=True)                # (1, M)
        st_ref[0, 0] = jnp.concatenate([s1, s2], axis=0)          # one (2, M) store

    y, stats = pl.pallas_call(
        kernel,
        out_shape=(jax.ShapeDtypeStruct((N, S_pad, M), jnp.bfloat16),
                   jax.ShapeDtypeStruct((N, nS, 2, M), jnp.float32)),
        grid=(N, nS),
        in_specs=[
            pl.BlockSpec((1, tS, K_pad), lambda n, s: (n, s, 0)),
            pl.BlockSpec((K_pad, M), lambda n, s: (0, 0)),        # resident weight
            pl.BlockSpec((1, M), lambda n, s: (0, 0)),
        ],
        out_specs=(pl.BlockSpec((1, tS, M), lambda n, s: (n, s, 0)),
                   pl.BlockSpec((1, 1, 2, M), lambda n, s: (n, s, 0, 0))),
        compiler_params=pltpu.CompilerParams(
            dimension_semantics=("parallel", "parallel"),
            vmem_limit_bytes=VMEM_LIMIT),
    )(xb, wb, bb)
    return y, stats, S_pad, tS


def _norm_lrelu_pass2(y, scale, shift, S, tS, out_dtype, head_w=None, head_b=None):
    """v = y*scale + shift -> LeakyReLU; optionally also (act @ head_w + head_b)."""
    N, S_pad, M = y.shape
    nS = S_pad // tS
    sc = scale.reshape(N, 1, M).astype(jnp.float32)
    sh = shift.reshape(N, 1, M).astype(jnp.float32)
    cp = pltpu.CompilerParams(dimension_semantics=("parallel", "parallel"),
                              vmem_limit_bytes=VMEM_LIMIT)

    if head_w is None:
        def kernel(y_ref, sc_ref, sh_ref, o_ref):
            v = y_ref[0].astype(jnp.float32) * sc_ref[0] + sh_ref[0]
            o_ref[0] = jnp.where(v >= 0, v, NEG_SLOPE * v).astype(o_ref.dtype)

        out = pl.pallas_call(
            kernel,
            out_shape=jax.ShapeDtypeStruct((N, S_pad, M), out_dtype),
            grid=(N, nS),
            in_specs=[pl.BlockSpec((1, tS, M), lambda n, s: (n, s, 0)),
                      pl.BlockSpec((1, 1, M), lambda n, s: (n, 0, 0)),
                      pl.BlockSpec((1, 1, M), lambda n, s: (n, 0, 0))],
            out_specs=pl.BlockSpec((1, tS, M), lambda n, s: (n, s, 0)),
            compiler_params=cp,
        )(y, sc, sh)
        return out[:, :S], None

    HM = head_w.shape[1]
    hw = head_w.astype(jnp.bfloat16)
    hb = head_b.astype(jnp.float32).reshape(1, HM)

    def kernel(y_ref, sc_ref, sh_ref, hw_ref, hb_ref, o_ref, h_ref):
        v = y_ref[0].astype(jnp.float32) * sc_ref[0] + sh_ref[0]
        act = jnp.where(v >= 0, v, NEG_SLOPE * v)
        o_ref[0] = act.astype(o_ref.dtype)
        # fused 1x1x1 deep-supervision head on the already-normalized tile
        h_ref[0] = (jnp.dot(act.astype(jnp.bfloat16), hw_ref[...],
                            preferred_element_type=jnp.float32) + hb_ref[...])

    out, head = pl.pallas_call(
        kernel,
        out_shape=(jax.ShapeDtypeStruct((N, S_pad, M), out_dtype),
                   jax.ShapeDtypeStruct((N, S_pad, HM), jnp.float32)),
        grid=(N, nS),
        in_specs=[pl.BlockSpec((1, tS, M), lambda n, s: (n, s, 0)),
                  pl.BlockSpec((1, 1, M), lambda n, s: (n, 0, 0)),
                  pl.BlockSpec((1, 1, M), lambda n, s: (n, 0, 0)),
                  pl.BlockSpec((M, HM), lambda n, s: (0, 0)),
                  pl.BlockSpec((1, HM), lambda n, s: (0, 0))],
        out_specs=(pl.BlockSpec((1, tS, M), lambda n, s: (n, s, 0)),
                   pl.BlockSpec((1, tS, HM), lambda n, s: (n, s, 0))),
        compiler_params=cp,
    )(y, sc, sh, hw, hb)
    return out[:, :S], head[:, :S]


def conv3d_in_lrelu(x, w_col, bias, gamma, beta, *, stride, cin,
                    out_dtype=jnp.bfloat16, head_w=None, head_b=None):
    """3x3x3 conv (pad 1) + InstanceNorm3d(affine) + LeakyReLU(0.01).
    x is channels-last; only its first `cin` (logical) channels are used.
    Returns (out, head_out) with head_out=None when no head weights given."""
    N, D, H, W, _ = x.shape
    M = w_col.shape[1]
    k, pad = 3, 1
    xs = x[..., :cin].astype(jnp.bfloat16)
    xp = jnp.pad(xs, ((0, 0), (pad, pad), (pad, pad), (pad, pad), (0, 0)))
    Do = (D + 2 * pad - k) // stride + 1
    Ho = (H + 2 * pad - k) // stride + 1
    Wo = (W + 2 * pad - k) // stride + 1
    # TODO(synk): stream the 27 taps from a halo'd HBM window inside the kernel
    # (extra reduction grid axis) instead of materializing im2col; with the
    # de-padded Cin the im2col traffic is already 27*Cin_logical (bf16).
    cols = []
    for kd in range(k):
        for kh in range(k):
            for kw in range(k):
                cols.append(xp[:, kd:kd + stride * Do:stride,
                               kh:kh + stride * Ho:stride,
                               kw:kw + stride * Wo:stride, :])
    S = Do * Ho * Wo
    x_col = jnp.concatenate(cols, axis=-1).reshape(N, S, 27 * cin)

    y, stats, S_pad, tS = _conv_pass1(x_col, w_col, bias)

    # Combine per-tile stats in tiny XLA glue.  Padded rows of y are exactly
    # `bias` (zero inputs), so their contribution is subtracted analytically.
    n_pad = S_pad - S
    b32 = bias.astype(jnp.float32)
    s1 = jnp.sum(stats[:, :, 0, :], axis=1) - n_pad * b32[None, :]
    s2 = jnp.sum(stats[:, :, 1, :], axis=1) - n_pad * (b32 * b32)[None, :]
    mean = s1 / S
    var = jnp.maximum(s2 / S - mean * mean, 0.0)          # biased, as InstanceNorm
    scale = gamma[None, :] * lax.rsqrt(var + IN_EPS)
    shift = beta[None, :] - mean * scale

    out, head = _norm_lrelu_pass2(y, scale, shift, S, tS, out_dtype, head_w, head_b)
    out = out.reshape(N, Do, Ho, Wo, M)
    if head is not None:
        head = head.reshape(N, Do, Ho, Wo, -1)
    return out, head


def transp_conv3d_2x(x, w2, bias, *, cin):
    """ConvTranspose3d(kernel=2, stride=2) as one matmul over the 8 sub-positions."""
    N, Di, Hi, Wi, _ = x.shape
    C = w2.shape[1] // 8
    xs = x[..., :cin]
    y = matmul_bias(xs.reshape(N, Di * Hi * Wi, cin), w2, bias,
                    out_dtype=jnp.bfloat16)                        # (N, S, 8*C)
    y = y.reshape(N, Di, Hi, Wi, 2, 2, 2, C)
    # TODO(synk): fold this 8-way spatial interleave into the kernel's output
    # store (manual strided DMA) instead of an XLA transpose round trip.
    y = jnp.transpose(y, (0, 1, 4, 2, 5, 3, 6, 7))
    return y.reshape(N, 2 * Di, 2 * Hi, 2 * Wi, C)


# ---------------------------------------------------------------------------
# Kernel C: language cross-attention (tiled over image tokens)
# ---------------------------------------------------------------------------
def lang_cross_attention(feat, lang_rep, wk, wv, wq, out_dtype=jnp.bfloat16):
    """Stand-in LangCrossAtt: per-voxel attention over language tokens + residual.
    feat: (N,D,H,W,Cpad); lang_rep: (N,L,E); wk:(E,dk); wv:(E,Cpad); wq:(Cpad,dk)
    (the 1/sqrt(dk) scale is folded into wq at init)."""
    N, D, H, W, C = feat.shape
    L = lang_rep.shape[1]
    dk = wk.shape[1]

    # Tiny per-sample language projections in plain XLA; k pre-transposed to
    # (N, dk, L) so the kernel uses a plain jnp.dot (no per-tile transpose).
    kT = jnp.einsum("nle,ed->ndl", lang_rep, wk).astype(jnp.bfloat16)
    v = jnp.einsum("nle,ec->nlc", lang_rep, wv).astype(jnp.bfloat16)

    S = D * H * W
    tS, S_pad = _s_tiling(S)
    nS = S_pad // tS
    f = _pad_axis(feat.reshape(N, S, C).astype(jnp.bfloat16), 1, S_pad)
    wqb = wq.astype(jnp.bfloat16)

    def kernel(f_ref, kT_ref, v_ref, wq_ref, o_ref):
        fb = f_ref[0]                                              # (tS, C)
        q = jnp.dot(fb, wq_ref[...], preferred_element_type=jnp.float32)
        s = jnp.dot(q.astype(jnp.bfloat16), kT_ref[0],
                    preferred_element_type=jnp.float32)            # (tS, L)
        s = s - jnp.max(s, axis=-1, keepdims=True)
        p = jnp.exp(s)
        p = p / jnp.sum(p, axis=-1, keepdims=True)
        ctx = jnp.dot(p.astype(jnp.bfloat16), v_ref[0],
                      preferred_element_type=jnp.float32)          # (tS, C)
        o_ref[0] = (fb.astype(jnp.float32) + ctx).astype(o_ref.dtype)

    out = pl.pallas_call(
        kernel,
        out_shape=jax.ShapeDtypeStruct((N, S_pad, C), out_dtype),
        grid=(N, nS),
        in_specs=[
            pl.BlockSpec((1, tS, C), lambda n, s: (n, s, 0)),
            pl.BlockSpec((1, dk, L), lambda n, s: (n, 0, 0)),
            pl.BlockSpec((1, L, C), lambda n, s: (n, 0, 0)),
            pl.BlockSpec((C, dk), lambda n, s: (0, 0)),
        ],
        out_specs=pl.BlockSpec((1, tS, C), lambda n, s: (n, s, 0)),
        compiler_params=pltpu.CompilerParams(
            dimension_semantics=("parallel", "parallel"),
            vmem_limit_bytes=VMEM_LIMIT),
    )(f, kT, v, wqb)
    return out[:, :S].reshape(N, D, H, W, C)


# ---------------------------------------------------------------------------
# DynUNetSkipLayer wrapper (mirrors the PyTorch control flow)
# ---------------------------------------------------------------------------
class DynUNetSkipLayer:
    """Mirrors the reference forward.  Note: `heads` is mutated in place exactly
    like the PyTorch module; this side effect does not survive jax.jit of the
    whole layer — keep the wrapper un-jitted or thread heads functionally."""

    def __init__(self, index, downsample, upsample, next_layer, heads=None,
                 super_head=False, down_channels=None):
        self.downsample = downsample
        self.next_layer = next_layer
        self.upsample = upsample
        self.super_head = super_head       # True => head fused into upsample epilogue
        self.heads = heads
        self.index = index
        self.down_channels = down_channels

    def __call__(self, x, lang_rep):
        downout = self.downsample(x)
        if self.down_channels == 192:      # mirrors `downout.size()[1] == 192`
            nextout = self.next_layer(downout)
        else:
            nextout = self.next_layer(downout, lang_rep)
        upout, headout = self.upsample(nextout, downout, lang_rep)
        if self.super_head and self.heads is not None and self.index > 0:
            # super_head (1x1x1 conv) is fused into the cat-conv epilogue above.
            self.heads[self.index - 1] = headout
        return upout


# ---------------------------------------------------------------------------
# Deterministic parameter construction (logical-Cin weights, lane-padded Cout)
# ---------------------------------------------------------------------------
def _embed(w, shape):
    out = jnp.zeros(shape, jnp.float32)
    return out.at[tuple(slice(0, d) for d in w.shape)].set(w)


def _init_params(key, cin, c1, c2, emb, dk, n_classes):
    c1p, c2p = _ceil_to(c1, LANE), _ceil_to(c2, LANE)
    nclsp = _ceil_to(n_classes, LANE)
    ks = jax.random.split(key, 12)
    s = 0.1
    p = {"pads": dict(c1p=c1p, c2p=c2p, nclsp=nclsp)}

    # downsample: conv3d k3 s2, cin -> c1 (K = 27*cin un-padded; Cout lane-padded)
    wd = jax.random.normal(ks[0], (27 * cin, c1), jnp.float32) * s
    p["down"] = dict(w=_embed(wd, (27 * cin, c1p)), b=jnp.zeros((c1p,)),
                     g=_embed(jnp.ones((c1,)), (c1p,)), be=jnp.zeros((c1p,)), cin=cin)

    # next_layer (bottleneck stand-in): conv3d k3 s2 c1 -> c2 + lang attention
    wn = jax.random.normal(ks[1], (27 * c1, c2), jnp.float32) * s
    p["next"] = dict(
        w=_embed(wn, (27 * c1, c2p)), b=jnp.zeros((c2p,)),
        g=_embed(jnp.ones((c2,)), (c2p,)), be=jnp.zeros((c2p,)), cin=c1,
        wq=_embed(jax.random.normal(ks[2], (c2, dk)) * s / math.sqrt(dk), (c2p, dk)),
        wk=jax.random.normal(ks[3], (emb, dk)) * s,
        wv=_embed(jax.random.normal(ks[4], (emb, c2)) * s, (emb, c2p)))

    # upsample: transp conv c2 -> c1, lang attention, cat conv (2*c1) -> c1
    tw = jax.random.normal(ks[5], (c2, 8, c1)) * s
    twp = _embed(tw, (c2, 8, c1p)).reshape(c2, 8 * c1p)
    wcat = jax.random.normal(ks[9], (27, 2 * c1, c1)) * s
    wcatp = _embed(wcat, (27, 2 * c1, c1p)).reshape(27 * 2 * c1, c1p)
    p["up"] = dict(
        tw=twp, tb=jnp.zeros((8 * c1p,)), tcin=c2,
        wq=_embed(jax.random.normal(ks[6], (c1, dk)) * s / math.sqrt(dk), (c1p, dk)),
        wk=jax.random.normal(ks[7], (emb, dk)) * s,
        wv=_embed(jax.random.normal(ks[8], (emb, c1)) * s, (emb, c1p)),
        w=wcatp, b=jnp.zeros((c1p,)),
        g=_embed(jnp.ones((c1,)), (c1p,)), be=jnp.zeros((c1p,)), cin=2 * c1)

    # deep-supervision head: 1x1x1 conv c1 -> n_classes (fused into cat-conv epilogue)
    p["head"] = dict(w=_embed(jax.random.normal(ks[10], (c1, n_classes)) * s, (c1p, nclsp)),
                     b=jnp.zeros((nclsp,)))
    return p


def build_layer(params, heads, logical):
    pd, pn, pu, ph = params["down"], params["next"], params["up"], params["head"]
    c1 = logical["c1"]

    def downsample(x):
        out, _ = conv3d_in_lrelu(x, pd["w"], pd["b"], pd["g"], pd["be"],
                                 stride=2, cin=pd["cin"])
        return out

    def next_layer(x, lang_rep=None):
        # TODO(synk): stand-in for the deeper recursive DynUNet levels / bottleneck.
        y, _ = conv3d_in_lrelu(x, pn["w"], pn["b"], pn["g"], pn["be"],
                               stride=2, cin=pn["cin"])
        return lang_cross_attention(y, lang_rep, pn["wk"], pn["wv"], pn["wq"])

    def upsample(nextout, skip, lang_rep):
        up = transp_conv3d_2x(nextout, pu["tw"], pu["tb"], cin=pu["tcin"])
        up = lang_cross_attention(up, lang_rep, pu["wk"], pu["wv"], pu["wq"])
        # concat the logical channels of up and skip, then cat-conv + IN + LeakyReLU
        # with the 1x1x1 deep-supervision head fused into the pass-2 epilogue.
        cat = jnp.concatenate([up[..., :c1], skip[..., :c1]], axis=-1)
        out, head = conv3d_in_lrelu(cat, pu["w"], pu["b"], pu["g"], pu["be"],
                                    stride=1, cin=pu["cin"], out_dtype=jnp.float32,
                                    head_w=ph["w"], head_b=ph["b"])
        return out, head

    return DynUNetSkipLayer(index=1, downsample=downsample, upsample=upsample,
                            next_layer=next_layer, heads=heads,
                            super_head=True, down_channels=c1)


if __name__ == "__main__":
    # Small shapes: batch=2, in-channels=4, spatial=8^3, lang tokens=8, embed=32
    N, CIN, D = 2, 4, 8
    C1, C2, EMB, DK, NCLS, L = 8, 16, 32, 16, 2, 8

    key = jax.random.PRNGKey(0)
    kx, kl, kp = jax.random.split(key, 3)

    # PyTorch-convention input (N, C, D, H, W) -> channels-last for the kernels
    x_ncdhw = jax.random.normal(kx, (N, CIN, D, D, D), dtype=jnp.float32)
    x = jnp.transpose(x_ncdhw, (0, 2, 3, 4, 1))               # (N, D, H, W, C)
    # TODO(synk): the BERT-style language encoder is external; lang_rep (word
    # representations) is taken as an input here.
    lang_rep = jax.random.normal(kl, (N, L, EMB), dtype=jnp.float32)

    params = _init_params(kp, CIN, C1, C2, EMB, DK, NCLS)
    heads = [None]
    layer = build_layer(params, heads, dict(c1=C1))

    upout_padded = jax.block_until_ready(layer(x, lang_rep))
    head_padded = jax.block_until_ready(heads[0])

    # drop the lane-padding channels for the external view
    upout = upout_padded[..., :C1].astype(jnp.float32)
    head_out = head_padded[..., :NCLS]

    assert upout.shape == (N, D // 2, D // 2, D // 2, C1), upout.shape
    assert head_out.shape == (N, D // 2, D // 2, D // 2, NCLS), head_out.shape
    assert bool(jnp.all(jnp.isfinite(upout))) and bool(jnp.all(jnp.isfinite(head_out)))
    print("KERNEL_OK")
</pallas_src>

<mosaic_0001>
module attributes {stable_mosaic.version = 11 : i64} {
  func.func @kernel(%arg0: i32, %arg1: i32, %arg2: memref<1x64x128xbf16, #tpu.memory_space<vmem>>, %arg3: memref<128x128xbf16, #tpu.memory_space<vmem>>, %arg4: memref<1x128xf32, #tpu.memory_space<vmem>>, %arg5: memref<1x64x128xbf16, #tpu.memory_space<vmem>>, %arg6: memref<1x1x2x128xf32, #tpu.memory_space<vmem>>) attributes {dimension_semantics = [#tpu.dimension_semantics<parallel>, #tpu.dimension_semantics<parallel>], iteration_bounds = array<i64: 2, 1>, scalar_prefetch = 0 : i64, scratch_operands = 0 : i64, tpu.core_type = #tpu.core_type<tc>, window_params = [{transform_indices = @transform_0, window_bounds = array<i64: 1, 64, 128>}, {pipeline_mode = #tpu.pipeline_mode<synchronous>, transform_indices = @transform_1, window_bounds = array<i64: 128, 128>}, {pipeline_mode = #tpu.pipeline_mode<synchronous>, transform_indices = @transform_2, window_bounds = array<i64: 1, 128>}, {transform_indices = @transform_3, window_bounds = array<i64: 1, 64, 128>}, {transform_indices = @transform_4, window_bounds = array<i64: 1, 1, 2, 128>}]} {
    %c0 = arith.constant 0 : index
    %c0_0 = arith.constant 0 : index
    %c0_1 = arith.constant 0 : index
    %0 = vector.load %arg2[%c0, %c0_0, %c0_1] : memref<1x64x128xbf16, #tpu.memory_space<vmem>>, vector<1x64x128xbf16>
    %1 = vector.shape_cast %0 : vector<1x64x128xbf16> to vector<64x128xbf16>
    %c0_2 = arith.constant 0 : index
    %c0_3 = arith.constant 0 : index
    %2 = vector.load %arg3[%c0_2, %c0_3] : memref<128x128xbf16, #tpu.memory_space<vmem>>, vector<128x128xbf16>
    %cst = arith.constant dense<0.000000e+00> : vector<64x128xf32>
    %3 = tpu.matmul %1, %2, %cst {dimension_numbers = #tpu.dot_dimension_numbers<[1], [0], [0], [1], [0, 0, 1, 1], [], []>} : vector<64x128xbf16>, vector<128x128xbf16>, vector<64x128xf32> -> vector<64x128xf32>
    %c0_4 = arith.constant 0 : index
    %c0_5 = arith.constant 0 : index
    %4 = vector.load %arg4[%c0_4, %c0_5] : memref<1x128xf32, #tpu.memory_space<vmem>>, vector<1x128xf32>
    %5 = vector.broadcast %4 : vector<1x128xf32> to vector<64x128xf32>
    %6 = arith.addf %3, %5 : vector<64x128xf32>
    %7 = arith.truncf %6 : vector<64x128xf32> to vector<64x128xbf16>
    %c0_6 = arith.constant 0 : index
    %c0_7 = arith.constant 0 : index
    %c0_8 = arith.constant 0 : index
    %8 = vector.load %arg5[%c0_6, %c0_7, %c0_8] : memref<1x64x128xbf16, #tpu.memory_space<vmem>>, vector<1x64x128xbf16>
    %9 = vector.shape_cast %8 : vector<1x64x128xbf16> to vector<64x128xbf16>
    %10 = vector.shape_cast %7 : vector<64x128xbf16> to vector<1x64x128xbf16>
    tpu.vector_store %arg5[%c0_6, %c0_7, %c0_8], %10 {strides = array<i32>} : memref<1x64x128xbf16, #tpu.memory_space<vmem>>, vector<1x64x128xbf16>,
    %cst_9 = arith.constant dense<0.000000e+00> : vector<128xf32>
    %11 = vector.multi_reduction <add>, %6, %cst_9 [0] : vector<64x128xf32> to vector<128xf32>
    %12 = vector.shape_cast %11 : vector<128xf32> to vector<1x128xf32>
    %13 = arith.mulf %6, %6 : vector<64x128xf32>
    %cst_10 = arith.constant dense<0.000000e+00> : vector<128xf32>
    %14 = vector.multi_reduction <add>, %13, %cst_10 [0] : vector<64x128xf32> to vector<128xf32>
    %15 = vector.shape_cast %14 : vector<128xf32> to vector<1x128xf32>
    %16 = tpu.concatenate %12, %15 in 0 : vector<1x128xf32>, vector<1x128xf32> -> vector<2x128xf32>
    %c0_11 = arith.constant 0 : index
    %c0_12 = arith.constant 0 : index
    %c0_13 = arith.constant 0 : index
    %c0_14 = arith.constant 0 : index
    %17 = vector.load %arg6[%c0_11, %c0_12, %c0_13, %c0_14] : memref<1x1x2x128xf32, #tpu.memory_space<vmem>>, vector<1x1x2x128xf32>
    %18 = vector.shape_cast %17 : vector<1x1x2x128xf32> to vector<2x128xf32>
    %19 = vector.shape_cast %16 : vector<2x128xf32> to vector<1x1x2x128xf32>
    tpu.vector_store %arg6[%c0_11, %c0_12, %c0_13, %c0_14], %19 {strides = array<i32>} : memref<1x1x2x128xf32, #tpu.memory_space<vmem>>, vector<1x1x2x128xf32>,
    return
  }
  func.func @transform_0(%arg0: i32, %arg1: i32) -> (i32, i32, i32) {
    %c0_i32 = arith.constant 0 : i32
    %c0_i32_0 = arith.constant 0 : i32
    return %arg0, %arg1, %c0_i32 : i32, i32, i32
  }
  func.func @transform_1(%arg0: i32, %arg1: i32) -> (i32, i32) {
    %c0_i32 = arith.constant 0 : i32
    %c0_i32_0 = arith.constant 0 : i32
    %c0_i32_1 = arith.constant 0 : i32
    return %c0_i32, %c0_i32_0 : i32, i32
  }
  func.func @transform_2(%arg0: i32, %arg1: i32) -> (i32, i32) {
    %c0_i32 = arith.constant 0 : i32
    %c0_i32_0 = arith.constant 0 : i32
    %c0_i32_1 = arith.constant 0 : i32
    return %c0_i32, %c0_i32_0 : i32, i32
  }
  func.func @transform_3(%arg0: i32, %arg1: i32) -> (i32, i32, i32) {
    %c0_i32 = arith.constant 0 : i32
    %c0_i32_0 = arith.constant 0 : i32
    return %arg0, %arg1, %c0_i32 : i32, i32, i32
  }
  func.func @transform_4(%arg0: i32, %arg1: i32) -> (i32, i32, i32, i32) {
    %c0_i32 = arith.constant 0 : i32
    %c0_i32_0 = arith.constant 0 : i32
    %c0_i32_1 = arith.constant 0 : i32
    return %arg0, %arg1, %c0_i32, %c0_i32_0 : i32, i32, i32, i32
  }
}

</mosaic_0001>

<llo_original>
// kernel: tpu_custom_call.1
$region0: #{tpu_custom_call.1}
  #allocation0 [shape = 'u32[]', space=smem, size = 0x4, offset = 0x4, fixed_abs, tag = 'smem constant byte address 0x4 - core index']
  #allocation1 [shape = 'u32[144,128]{1,0:T(1,128)}', space=vmem, size = 0x12000, scoped, tag = 'internal scratch']
  %s0 = inlined_call_operand.hbm [shape: bf16[2,64,128], index: 0, kind: input, shape index: {}]
  %s1 = inlined_call_operand.hbm [shape: bf16[128,128], index: 1, kind: input, shape index: {}]
  %s2 = inlined_call_operand.vmem [shape: f32[1,128], index: 2, kind: input, shape index: {}]
  %s3 = inlined_call_operand.hbm [shape: bf16[2,64,128], index: 3, kind: output, shape index: {0}]
  %s4 = inlined_call_operand.hbm [shape: f32[2,1,2,128], index: 4, kind: output, shape index: {1}]
  %5 = xla_tuple %s3, %s4
  %s6 = sld [smem:[#allocation0]]
  $region61: #{tpu_custom_call.1} parent=0
    _
  %s8 = ssub.s32 1, %s6
  %s9 = scalar_select 0, %s8, %s6
  $region1: #{tpu_custom_call.1} parent=0
    #allocation2 [shape = 'u8[32768]{0}', space=vmem, size = 0x8000, scoped, tag = 'input window, operand 0']
    #allocation3 [shape = 's32[2]{0}', space=sflag, size = 0x8, scoped, tag = 'scoped memory for tpu_custom_call.1']
    #allocation4 [shape = 's32[2]{0}', space=sflag, size = 0x8, scoped, tag = 'scoped memory for tpu_custom_call.1']
    #allocation5 [shape = 'u8[32768]{0}', space=vmem, size = 0x8000, scoped, tag = 'input window, operand 1, single buffered']
    #allocation6 [shape = 's32[1]{0}', space=sflag, size = 0x4, scoped, tag = 'scoped memory for tpu_custom_call.1']
    #allocation7 [shape = 'u8[32768]{0}', space=vmem, size = 0x8000, scoped, tag = 'output window, operand 0']
    #allocation8 [shape = 'u8[2048]{0}', space=vmem, size = 0x800, scoped, tag = 'output window, operand 1']
    #allocation9 [shape = 's32[2]{0}', space=sflag, size = 0x8, scoped, tag = 'scoped memory for tpu_custom_call.1']
    %10 = vsyncpa [#allocation3], 0
    %s11 = scalar_lea.sflag [#allocation3], 1
    %12 = vsyncpa %s11, 0
    %13 = vsyncpa [#allocation6], 0
    %14 = vsyncpa [#allocation4], 0
    %s15 = scalar_lea.sflag [#allocation4], 1
    %16 = vsyncpa %s15, 0
    %17 = vsyncpa [#allocation9], 0
    %s18 = scalar_lea.sflag [#allocation9], 1
    %19 = vsyncpa %s18, 0
    loop: start=0, step=1, limit=4
    $region2: #{tpu_custom_call.1} parent=1 // loop_pre_header
      _
    $region3: #{tpu_custom_call.1} parent=1 // loop_header
      %s21 = sphi 0, %s25
      %p22 = scmp.ge.s32.totalorder %s21, 4
      %s28 = sphi 0, %s40
      %s29 = sphi 0, %s36
      %s30 = sphi 0, %s28
      %s31 = sphi 0, %s29
      %s32 = sphi 0, %s30
      %s33 = sphi 0, %s31
      %s45 = sphi 0, %s47
      %s48 = sphi 0, %s45
      %s49 = sphi 0, %s48
      %s65 = sphi 0, %s49
      %s69 = sphi 0, %s69
      %s71 = sphi 0, %s69
      %s72 = sphi 0, %s71
      %s86 = sphi 0, %s72
      %s90 = sphi 0, %s90
      %s92 = sphi 0, %s90
      %s93 = sphi 0, %s92
      %s107 = sphi 0, %s93
      %s115 = sphi 0, %s117
      %s118 = sphi 0, %s115
      %s119 = sphi 0, %s118
      %s135 = sphi 0, %s119
      %s143 = sphi 0, %s145
      %s146 = sphi 0, %s143
      %s147 = sphi 0, %s146
      %s163 = sphi 0, %s147
    $region4: #{tpu_custom_call.1} parent=1 // loop_header_branch
      %24 = sbr.rel (%p22) target = $region8
    $region5: #{tpu_custom_call.1} parent=1 // loop_body
      %s26 = ssub.s32 %s21, 1
      %s27 = ssub.s32 %s21, 2
      %s34 = sadd.s32 1, %s29
      %p35 = scmp.ge.s32.totalorder %s34, 1
      %s36 = scalar_select %p35, 0, %s34
      %s37 = sadd.s32 1, %s28
      %s38 = scalar_select %p35, %s37, %s28
      %p39 = scmp.ge.s32.totalorder %s38, 2
      %s40 = scalar_select %p39, 0, %s38
      %s41 = ssub.s32 %s28, %s40
      %s42 = ssub.s32 %s29, %s36
      %s43 = sor.u32 %s41, %s42
      %p44 = scmp.eq.s32.totalorder %s43, 0
      %s46 = sadd.s32 %s45, 1
      %s47 = scalar_select %p44, %s45, %s46
      %p50 = pneg %p44
      %p51 = scmp.eq.s32.totalorder %s21, 1
      %p52 = por %p50, %p51
      %p53 = scmp.ne.s32.totalorder %s45, %s48
      %p54 = scmp.eq.s32.totalorder %s21, 0
      %p55 = por %p53, %p54
      %p56 = scmp.ne.s32.totalorder %s45, %s48
      %p57 = scmp.eq.s32.totalorder %s26, 1
      %p58 = por %p56, %p57
      %p59 = scmp.ne.s32.totalorder %s48, %s49
      %p60 = scmp.eq.s32.totalorder %s26, 0
      %p61 = por %p59, %p60
      %p62 = scmp.ne.s32.totalorder %s48, %s49
      %p63 = scmp.eq.s32.totalorder %s27, 1
      %p64 = por %p62, %p63
      %p66 = scmp.ne.s32.totalorder %s49, %s65
      %p67 = scmp.eq.s32.totalorder %s27, 0
      %p68 = por %p66, %p67
      %s70 = sadd.s32 %s69, 1
      %p73 = scmp.eq.s32.totalorder %s21, 1
      %p74 = scmp.ne.s32.totalorder %s69, %s71
      %p75 = scmp.eq.s32.totalorder %s21, 0
      %p76 = por %p74, %p75
      %p77 = scmp.ne.s32.totalorder %s69, %s71
      %p78 = scmp.eq.s32.totalorder %s26, 1
      %p79 = por %p77, %p78
      %p80 = scmp.ne.s32.totalorder %s71, %s72
      %p81 = scmp.eq.s32.totalorder %s26, 0
      %p82 = por %p80, %p81
      %p83 = scmp.ne.s32.totalorder %s71, %s72
      %p84 = scmp.eq.s32.totalorder %s27, 1
      %p85 = por %p83, %p84
      %p87 = scmp.ne.s32.totalorder %s72, %s86
      %p88 = scmp.eq.s32.totalorder %s27, 0
      %p89 = por %p87, %p88
      %s91 = sadd.s32 %s90, 1
      %p94 = scmp.eq.s32.totalorder %s21, 1
      %p95 = scmp.ne.s32.totalorder %s90, %s92
      %p96 = scmp.eq.s32.totalorder %s21, 0
      %p97 = por %p95, %p96
      %p98 = scmp.ne.s32.totalorder %s90, %s92
      %p99 = scmp.eq.s32.totalorder %s26, 1
      %p100 = por %p98, %p99
      %p101 = scmp.ne.s32.totalorder %s92, %s93
      %p102 = scmp.eq.s32.totalorder %s26, 0
      %p103 = por %p101, %p102
      %p104 = scmp.ne.s32.totalorder %s92, %s93
      %p105 = scmp.eq.s32.totalorder %s27, 1
      %p106 = por %p104, %p105
      %p108 = scmp.ne.s32.totalorder %s93, %s107
      %p109 = scmp.eq.s32.totalorder %s27, 0
      %p110 = por %p108, %p109
      %s111 = ssub.s32 %s28, %s40
      %s112 = ssub.s32 %s29, %s36
      %s113 = sor.u32 %s111, %s112
      %p114 = scmp.eq.s32.totalorder %s113, 0
      %s116 = sadd.s32 %s115, 1
      %s117 = scalar_select %p114, %s115, %s116
      %p120 = pneg %p114
      %p121 = scmp.eq.s32.totalorder %s21, 1
      %p122 = por %p120, %p121
      %p123 = scmp.ne.s32.totalorder %s115, %s118
      %p124 = scmp.eq.s32.totalorder %s21, 0
      %p125 = por %p123, %p124
      %p126 = scmp.ne.s32.totalorder %s115, %s118
      %p127 = scmp.eq.s32.totalorder %s26, 1
      %p128 = por %p126, %p127
      %p129 = scmp.ne.s32.totalorder %s118, %s119
      %p130 = scmp.eq.s32.totalorder %s26, 0
      %p131 = por %p129, %p130
      %p132 = scmp.ne.s32.totalorder %s118, %s119
      %p133 = scmp.eq.s32.totalorder %s27, 1
      %p134 = por %p132, %p133
      %p136 = scmp.ne.s32.totalorder %s119, %s135
      %p137 = scmp.eq.s32.totalorder %s27, 0
      %p138 = por %p136, %p137
      %s139 = ssub.s32 %s28, %s40
      %s140 = ssub.s32 %s29, %s36
      %s141 = sor.u32 %s139, %s140
      %p142 = scmp.eq.s32.totalorder %s141, 0
      %s144 = sadd.s32 %s143, 1
      %s145 = scalar_select %p142, %s143, %s144
      %p148 = pneg %p142
      %p149 = scmp.eq.s32.totalorder %s21, 1
      %p150 = por %p148, %p149
      %p151 = scmp.ne.s32.totalorder %s143, %s146
      %p152 = scmp.eq.s32.totalorder %s21, 0
      %p153 = por %p151, %p152
      %p154 = scmp.ne.s32.totalorder %s143, %s146
      %p155 = scmp.eq.s32.totalorder %s26, 1
      %p156 = por %p154, %p155
      %p157 = scmp.ne.s32.totalorder %s146, %s147
      %p158 = scmp.eq.s32.totalorder %s26, 0
      %p159 = por %p157, %p158
      %p160 = scmp.ne.s32.totalorder %s146, %s147
      %p161 = scmp.eq.s32.totalorder %s27, 1
      %p162 = por %p160, %p161
      %p164 = scmp.ne.s32.totalorder %s147, %s163
      %p165 = scmp.eq.s32.totalorder %s27, 0
      %p166 = por %p164, %p165
      %p167 = scmp.le.s32.totalorder 1, %s21
      %p168 = scmp.lt.s32.totalorder %s21, 3
      %p169 = pnand %p167, %p168
      %p170 = pneg %p169
      // Predicated region
      $region9: #{tpu_custom_call.1} parent=5 // pred_check
        _
      $region10: #{tpu_custom_call.1} parent=5 // pred_check_branch
        %172 = sbr.rel (%p169) target = $region12
      $region11: #{tpu_custom_call.1} parent=5 // pred_region
        %s173 = ssub.s32 %s21, 1
        // Predicated region
        $region13: #{tpu_custom_call.1} parent=11 // pred_check
          %p174 = pneg %p82
        $region14: #{tpu_custom_call.1} parent=11 // pred_check_branch
          %176 = sbr.rel (%p174) target = $region16
        $region15: #{tpu_custom_call.1} parent=11 // pred_region
          %s178 = ssub.s32 1024, 1024
          %179 = vsyncadd [#allocation6], %s178
          %s180 = sshll.u32 [#allocation5], 4
          %s181 = int_to_ptr.vmem [resolvable:$true] %s180
          %186 = dma.hbm_to_vmem [thread:$0]  %s1, 1024, %s181, [#allocation6], 64, 64, 4
        $region16: #{tpu_custom_call.1} parent=11 // pred_fallthru
          _
        // Predicated region
        $region17: #{tpu_custom_call.1} parent=11 // pred_check
          %p187 = pneg %p103
        $region18: #{tpu_custom_call.1} parent=11 // pred_check_branch
          %189 = sbr.rel (%p187) target = $region20
        $region19: #{tpu_custom_call.1} parent=11 // pred_region
          _
        $region20: #{tpu_custom_call.1} parent=11 // pred_fallthru
          _
      $region12: #{tpu_custom_call.1} parent=5 // pred_fallthru
        _
      %p190 = scmp.lt.s32.totalorder %s21, 2
      // Predicated region
      $region21: #{tpu_custom_call.1} parent=5 // pred_check
        %p191 = pneg %p190
      $region22: #{tpu_custom_call.1} parent=5 // pred_check_branch
        %193 = sbr.rel (%p191) target = $region24
      $region23: #{tpu_custom_call.1} parent=5 // pred_region
        // Predicated region
        $region25: #{tpu_custom_call.1} parent=23 // pred_check
          %p194 = pneg %p55
        $region26: #{tpu_custom_call.1} parent=23 // pred_check_branch
          %196 = sbr.rel (%p194) target = $region28
        $region27: #{tpu_custom_call.1} parent=23 // pred_region
          %s197 = sand.u32 %s45, 1
          %s198 = scalar_lea.sflag [#allocation3], %s197
          %s199 = sand.u32 %s45, 1
          %s200 = smul.addr %s199, 32
          %s201 = scalar_lea.vmem [#allocation2], %s200
          %s202 = smul.u32 8, %s29
          %s204 = ssub.s32 512, 512
          %205 = vsyncadd %s198, %s204
          %s206 = smul.addr %s28, 8
          %s207 = sadd.s32 %s202, %s206
          %s208 = smul.addr %s207, 64
          %s209 = scalar_lea.hbm %s0, %s208
          %s210 = sshll.u32 %s201, 4
          %s211 = int_to_ptr.vmem [resolvable:$true] %s210
          %216 = dma.hbm_to_vmem [thread:$0]  %s209, 512, %s211, %s198, 64, 64, 4
        $region28: #{tpu_custom_call.1} parent=23 // pred_fallthru
          _
      $region24: #{tpu_custom_call.1} parent=5 // pred_fallthru
        _
      %p217 = scmp.le.s32.totalorder 1, %s21
      %p218 = scmp.lt.s32.totalorder %s21, 3
      %p219 = pnand %p217, %p218
      %p220 = pneg %p219
      // Predicated region
      $region29: #{tpu_custom_call.1} parent=5 // pred_check
        _
      $region30: #{tpu_custom_call.1} parent=5 // pred_check_branch
        %222 = sbr.rel (%p219) target = $region32
      $region31: #{tpu_custom_call.1} parent=5 // pred_region
        %s223 = ssub.s32 %s21, 1
        %s224 = sand.u32 %s48, 1
        %s225 = scalar_lea.sflag [#allocation3], %s224
        %s226 = sand.u32 %s48, 1
        %s227 = smul.addr %s226, 32
        %s228 = scalar_lea.vmem [#allocation2], %s227
        // Predicated region
        $region33: #{tpu_custom_call.1} parent=31 // pred_check
          %p229 = pneg %p61
        $region34: #{tpu_custom_call.1} parent=31 // pred_check_branch
          %231 = sbr.rel (%p229) target = $region36
        $region35: #{tpu_custom_call.1} parent=31 // pred_region
          %232 = dma.done %s225, 512
        $region36: #{tpu_custom_call.1} parent=31 // pred_fallthru
          _
        // Predicated region
        $region37: #{tpu_custom_call.1} parent=31 // pred_check
          %p233 = pneg %p82
        $region38: #{tpu_custom_call.1} parent=31 // pred_check_branch
          %235 = sbr.rel (%p233) target = $region40
        $region39: #{tpu_custom_call.1} parent=31 // pred_region
          %236 = dma.done [#allocation6], 1024
        $region40: #{tpu_custom_call.1} parent=31 // pred_fallthru
          _
        %s237 = sand.u32 %s48, 1
        %s238 = scalar_lea.sflag [#allocation3], %s237
        %s239 = sand.u32 %s48, 1
        %s240 = smul.addr %s239, 32
        %s241 = scalar_lea.vmem [#allocation2], %s240
        %p242 = pneg %p61
        %p243 = pneg %p58
        %p244 = pneg %p82
        %p245 = pneg %p79
        %p246 = pneg %p103
        %p247 = pneg %p100
        %p248 = pneg %p131
        %p249 = pneg %p128
        %s250 = sand.u32 %s118, 1
        %s251 = scalar_lea.sflag [#allocation4], %s250
        %s252 = sand.u32 %s118, 1
        %s253 = smul.addr %s252, 32
        %s254 = scalar_lea.vmem [#allocation7], %s253
        %p255 = pneg %p159
        %p256 = pneg %p156
        %s257 = sand.u32 %s146, 1
        %s258 = scalar_lea.sflag [#allocation9], %s257
        %s259 = sand.u32 %s146, 1
        %s260 = smul.addr %s259, 2
        %s261 = scalar_lea.vmem [#allocation8], %s260
        %s262 = smul.u32 8, %s31
        %s263 = smul.u32 8, %s31
        %v265 = vld [vmem:[%s228] sm:$0xf]
        %v266 = vld [vmem:[%s228 + $0x4] sm:$0xf]
        %v267 = vld [vmem:[%s228 + $0x8] sm:$0xf]
        %v268 = vld [vmem:[%s228 + $0xc] sm:$0xf]
        %v269 = vld [vmem:[%s228 + $0x10] sm:$0xf]
        %v270 = vld [vmem:[%s228 + $0x14] sm:$0xf]
        %v271 = vld [vmem:[%s228 + $0x18] sm:$0xf]
        %v272 = vld [vmem:[%s228 + $0x1c] sm:$0xf]
        %v273 = vld [vmem:[#allocation5] sm:$0xf]
        %v274 = vld [vmem:[#allocation5 + $0x4] sm:$0xf]
        %v275 = vld [vmem:[#allocation5 + $0x8] sm:$0xf]
        %v276 = vld [vmem:[#allocation5 + $0xc] sm:$0xf]
        %v277 = vld [vmem:[#allocation5 + $0x10] sm:$0xf]
        %v278 = vld [vmem:[#allocation5 + $0x14] sm:$0xf]
        %v279 = vld [vmem:[#allocation5 + $0x18] sm:$0xf]
        %v280 = vld [vmem:[#allocation5 + $0x1c] sm:$0xf]
        %v281 = vld [vmem:[#allocation5 + $0x20] sm:$0xf]
        %v282 = vld [vmem:[#allocation5 + $0x24] sm:$0xf]
        %v283 = vld [vmem:[#allocation5 + $0x28] sm:$0xf]
        %v284 = vld [vmem:[#allocation5 + $0x2c] sm:$0xf]
        %v285 = vld [vmem:[#allocation5 + $0x30] sm:$0xf]
        %v286 = vld [vmem:[#allocation5 + $0x34] sm:$0xf]
        %v287 = vld [vmem:[#allocation5 + $0x38] sm:$0xf]
        %v288 = vld [vmem:[#allocation5 + $0x3c] sm:$0xf]
        %v289 = vld [vmem:[%s2] sm:$0x1]
        %v291 = vlaneseq
        %v292 = vshrl.u32 %v291, 7
        %v293 = vsub.s32 0, %v292
        %v294 = vrot.slane %v289, %v293
        %v304 = vunpack.c.l.b16 %v265
        %v305 = vunpack.c.l.b16 %v266
        %v306 = vunpack.c.l.b16 %v267
        %v307 = vunpack.c.l.b16 %v268
        %v308 = vunpack.c.l.b16 %v269
        %v309 = vunpack.c.l.b16 %v270
        %v310 = vunpack.c.l.b16 %v271
        %v311 = vunpack.c.l.b16 %v272
        %v312 = vpack.c.b16 %v305, %v304
        %v313 = vpack.c.b16 %v307, %v306
        %v314 = vpack.c.b16 %v309, %v308
        %v315 = vpack.c.b16 %v311, %v310
        %v336 = vunpack.c.l.b16 %v273
        %v337 = vunpack.c.l.b16 %v274
        %v338 = vunpack.c.l.b16 %v275
        %v339 = vunpack.c.l.b16 %v276
        %v340 = vunpack.c.l.b16 %v277
        %v341 = vunpack.c.l.b16 %v278
        %v342 = vunpack.c.l.b16 %v279
        %v343 = vunpack.c.l.b16 %v280
        %v344 = vunpack.c.l.b16 %v281
        %v345 = vunpack.c.l.b16 %v282
        %v346 = vunpack.c.l.b16 %v283
        %v347 = vunpack.c.l.b16 %v284
        %v348 = vunpack.c.l.b16 %v285
        %v349 = vunpack.c.l.b16 %v286
        %v350 = vunpack.c.l.b16 %v287
        %v351 = vunpack.c.l.b16 %v288
        %v352 = vpack.c.b16 %v337, %v336
        %v353 = vpack.c.b16 %v339, %v338
        %v354 = vpack.c.b16 %v341, %v340
        %v355 = vpack.c.b16 %v343, %v342
        %v356 = vpack.c.b16 %v345, %v344
        %v357 = vpack.c.b16 %v347, %v346
        %v358 = vpack.c.b16 %v349, %v348
        %v359 = vpack.c.b16 %v351, %v350
        %368 = vmatprep.subr.bf16.mxu0 0
        %369 = vmatpush1.bf16.msra.mxu0 %v359
        %370 = vmatprep.subr.bf16.mxu0 0
        %371 = vmatpush1.bf16.msra.mxu0 %v358
        %372 = vmatprep.subr.bf16.mxu0 0
        %373 = vmatpush1.bf16.msra.mxu0 %v357
        %374 = vmatprep.subr.bf16.mxu0 0
        %375 = vmatpush1.bf16.msra.mxu0 %v356
        %376 = vmatprep.subr.bf16.mxu0 0
        %377 = vmatpush1.bf16.msra.mxu0 %v355
        %378 = vmatprep.subr.bf16.mxu0 0
        %379 = vmatpush1.bf16.msra.mxu0 %v354
        %380 = vmatprep.subr.bf16.mxu0 0
        %381 = vmatpush1.bf16.msra.mxu0 %v353
        %382 = vmatprep.subr.bf16.mxu0 0
        %383 = vmatpush1.bf16.msra.mxu0 %v352
        %384 = vmatprep.subr.bf16.mxu0 0
        %385 = vmatpush2.bf16.msra.mxu0 0
        %386 = vmatprep.subr.bf16.mxu0 0
        %387 = vmatpush2.bf16.msra.mxu0 0
        %388 = vmatprep.subr.bf16.mxu0 0
        %389 = vmatpush2.bf16.msra.mxu0 0
        %390 = vmatprep.subr.bf16.mxu0 0
        %391 = vmatpush2.bf16.msra.mxu0 0
        %392 = vmatprep.subr.bf16.mxu0 0
        %393 = vmatpush2.bf16.msra.mxu0 0
        %394 = vmatprep.subr.bf16.mxu0 0
        %395 = vmatpush2.bf16.msra.mxu0 0
        %396 = vmatprep.subr.bf16.mxu0 0
        %397 = vmatpush2.bf16.msra.mxu0 0
        %398 = vmatprep.subr.bf16.mxu0 0
        %399 = vmatpush2.bf16.msra.mxu0 0
        %400 = vmatprep.mubr.bf16.mxu0 0
        %401 = vmatmul.mubr.bf16.gmra.mxu0 %v312
        %v402 = vpop.f32.mrf.mxu0
        %v403 = vadd.f32 %v294, %v402
        %v404 = vpop.f32.mrf.mxu0
        %v405 = vpop.f32.mrf.mxu0
        %v406 = vadd.f32 %v294, %v405
        %v407 = vpop.f32.mrf.mxu0
        %408 = vmatprep.mubr.bf16.mxu0 0
        %409 = vmatmul.mubr.bf16.gmra.mxu0 %v313
        %v410 = vpop.f32.mrf.mxu0
        %v411 = vadd.f32 %v294, %v410
        %v412 = vpop.f32.mrf.mxu0
        %v413 = vpop.f32.mrf.mxu0
        %v414 = vadd.f32 %v294, %v413
        %v415 = vpop.f32.mrf.mxu0
        %416 = vmatprep.mubr.bf16.mxu0 0
        %417 = vmatmul.mubr.bf16.gmra.mxu0 %v314
        %v418 = vpop.f32.mrf.mxu0
        %v419 = vadd.f32 %v294, %v418
        %v420 = vpop.f32.mrf.mxu0
        %v421 = vpop.f32.mrf.mxu0
        %v422 = vadd.f32 %v294, %v421
        %v423 = vpop.f32.mrf.mxu0
        %424 = vmatprep.mubr.bf16.mxu0 0
        %425 = vmatmul.mubr.bf16.gmra.mxu0 %v315
        %v426 = vpop.f32.mrf.mxu0
        %v427 = vadd.f32 %v294, %v426
        %v428 = vpop.f32.mrf.mxu0
        %v429 = vpop.f32.mrf.mxu0
        %v430 = vadd.f32 %v294, %v429
        %v431 = vpop.f32.mrf.mxu0
        %432 = vdwg.mxu0
        %v433 = vpack.c.bf16 %v406, %v403
        %v434 = vpack.c.bf16 %v414, %v411
        %v435 = vpack.c.bf16 %v422, %v419
        %v436 = vpack.c.bf16 %v430, %v427
        %v441 = vunpack.c.l.b16 %v433
        %v442 = vunpack.c.h.b16 %v433
        %v443 = vunpack.c.l.b16 %v434
        %v444 = vunpack.c.h.b16 %v434
        %v445 = vunpack.c.l.b16 %v435
        %v446 = vunpack.c.h.b16 %v435
        %v447 = vunpack.c.l.b16 %v436
        %v448 = vunpack.c.h.b16 %v436
        %v449 = vpack.c.b16 %v441, %v441
        %v450 = vpack.c.b16 %v442, %v442
        %v451 = vpack.c.b16 %v443, %v443
        %v452 = vpack.c.b16 %v444, %v444
        %v453 = vpack.c.b16 %v445, %v445
        %v454 = vpack.c.b16 %v446, %v446
        %v455 = vpack.c.b16 %v447, %v447
        %v456 = vpack.c.b16 %v448, %v448
        %465 = vst [vmem:[%s254] sm:$0xf] %v449
        %466 = vst [vmem:[%s254 + $0x4] sm:$0xf] %v450
        %467 = vst [vmem:[%s254 + $0x8] sm:$0xf] %v451
        %468 = vst [vmem:[%s254 + $0xc] sm:$0xf] %v452
        %469 = vst [vmem:[%s254 + $0x10] sm:$0xf] %v453
        %470 = vst [vmem:[%s254 + $0x14] sm:$0xf] %v454
        %471 = vst [vmem:[%s254 + $0x18] sm:$0xf] %v455
        %472 = vst [vmem:[%s254 + $0x1c] sm:$0xf] %v456
        %v473 = vadd.f32 %v403, %v406
        %v474 = vadd.f32 %v473, %v411
        %v475 = vadd.f32 %v474, %v414
        %v476 = vadd.f32 %v475, %v419
        %v477 = vadd.f32 %v476, %v422
        %v478 = vadd.f32 %v477, %v427
        %v479 = vadd.f32 %v478, %v430
        %v480 = vrot.slane %v479, 4
        %v481 = vadd.f32 %v479, %v480
        %v482 = vrot.slane %v481, 2
        %v483 = vadd.f32 %v481, %v482
        %v484 = vrot.slane %v483, 1
        %v485 = vadd.f32 %v483, %v484
        %v486 = vmul.f32 %v403, %v403
        %v487 = vmul.f32 %v406, %v406
        %v488 = vmul.f32 %v411, %v411
        %v489 = vmul.f32 %v414, %v414
        %v490 = vmul.f32 %v419, %v419
        %v491 = vmul.f32 %v422, %v422
        %v492 = vmul.f32 %v427, %v427
        %v493 = vmul.f32 %v430, %v430
        %v494 = vadd.f32 %v486, %v487
        %v495 = vadd.f32 %v494, %v488
        %v496 = vadd.f32 %v495, %v489
        %v497 = vadd.f32 %v496, %v490
        %v498 = vadd.f32 %v497, %v491
        %v499 = vadd.f32 %v498, %v492
        %v500 = vadd.f32 %v499, %v493
        %v501 = vrot.slane %v500, 4
        %v502 = vadd.f32 %v500, %v501
        %v503 = vrot.slane %v502, 2
        %v504 = vadd.f32 %v502, %v503
        %v505 = vrot.slane %v504, 1
        %v506 = vadd.f32 %v504, %v505
        %vm507 = vcmask 1040384
        %v508 = vsel %vm507, %v485, %v506
        %509 = vst [vmem:[%s261] sm:$0x3] %v508
        %s510 = sand.u32 %s118, 1
        %s511 = scalar_lea.sflag [#allocation4], %s510
        %s512 = sand.u32 %s118, 1
        %s513 = smul.addr %s512, 32
        %s514 = scalar_lea.vmem [#allocation7], %s513
        %s515 = sand.u32 %s146, 1
        %s516 = scalar_lea.sflag [#allocation9], %s515
        %s517 = sand.u32 %s146, 1
        %s518 = smul.addr %s517, 2
        %s519 = scalar_lea.vmem [#allocation8], %s518
        // Predicated region
        $region41: #{tpu_custom_call.1} parent=31 // pred_check
          %p520 = pneg %p128
        $region42: #{tpu_custom_call.1} parent=31 // pred_check_branch
          %522 = sbr.rel (%p520) target = $region44
        $region43: #{tpu_custom_call.1} parent=31 // pred_region
          %s523 = smul.u32 8, %s31
          %s525 = ssub.s32 512, 512
          %526 = vsyncadd %s511, %s525
          %s527 = smul.addr %s30, 8
          %s528 = sadd.s32 %s523, %s527
          %s529 = smul.addr %s528, 64
          %s530 = scalar_lea.hbm %s3, %s529
          %s531 = sshll.u32 %s514, 4
          %s532 = int_to_ptr.vmem [resolvable:$true] %s531
          %537 = dma.vmem_to_hbm [thread:$0]  %s532, 512, %s530, %s511, 64, 64, 4
        $region44: #{tpu_custom_call.1} parent=31 // pred_fallthru
          _
        // Predicated region
        $region45: #{tpu_custom_call.1} parent=31 // pred_check
          %p538 = pneg %p156
        $region46: #{tpu_custom_call.1} parent=31 // pred_check_branch
          %540 = sbr.rel (%p538) target = $region48
        $region47: #{tpu_custom_call.1} parent=31 // pred_region
          %s542 = ssub.s32 32, 32
          %543 = vsyncadd %s516, %s542
          %s544 = sadd.s32 %s31, %s30
          %s545 = smul.addr %s544, 32
          %s546 = scalar_lea.hbm %s4, %s545
          %s548 = sshll.u32 %s519, 4
          %s549 = int_to_ptr.vmem [resolvable:$true] %s548
          %551 = dma.vmem_to_hbm [thread:$0]  %s549, 32, %s546, %s516
        $region48: #{tpu_custom_call.1} parent=31 // pred_fallthru
          _
      $region32: #{tpu_custom_call.1} parent=5 // pred_fallthru
        _
      %p552 = scmp.le.s32.totalorder 2, %s21
      // Predicated region
      $region49: #{tpu_custom_call.1} parent=5 // pred_check
        %p553 = pneg %p552
      $region50: #{tpu_custom_call.1} parent=5 // pred_check_branch
        %555 = sbr.rel (%p553) target = $region52
      $region51: #{tpu_custom_call.1} parent=5 // pred_region
        %s556 = ssub.s32 %s21, 2
        // Predicated region
        $region53: #{tpu_custom_call.1} parent=51 // pred_check
          %p557 = pneg %p134
        $region54: #{tpu_custom_call.1} parent=51 // pred_check_branch
          %559 = sbr.rel (%p557) target = $region56
        $region55: #{tpu_custom_call.1} parent=51 // pred_region
          %s560 = sand.u32 %s119, 1
          %s561 = scalar_lea.sflag [#allocation4], %s560
          %s562 = sand.u32 %s119, 1
          %s563 = smul.addr %s562, 32
          %s564 = scalar_lea.vmem [#allocation7], %s563
          %565 = dma.done %s561, 512
        $region56: #{tpu_custom_call.1} parent=51 // pred_fallthru
          _
        // Predicated region
        $region57: #{tpu_custom_call.1} parent=51 // pred_check
          %p566 = pneg %p162
        $region58: #{tpu_custom_call.1} parent=51 // pred_check_branch
          %568 = sbr.rel (%p566) target = $region60
        $region59: #{tpu_custom_call.1} parent=51 // pred_region
          %s569 = sand.u32 %s147, 1
          %s570 = scalar_lea.sflag [#allocation9], %s569
          %s571 = sand.u32 %s147, 1
          %s572 = smul.addr %s571, 2
          %s573 = scalar_lea.vmem [#allocation8], %s572
          %574 = dma.done %s570, 32
        $region60: #{tpu_custom_call.1} parent=51 // pred_fallthru
          _
      $region52: #{tpu_custom_call.1} parent=5 // pred_fallthru
        _
    $region6: #{tpu_custom_call.1} parent=1 // loop_footer
      %s25 = sadd.s32 1, %s21
    $region7: #{tpu_custom_call.1} parent=1 // loop_footer_branch
      %20 = sbr.rel target = $region3
    $region8: #{tpu_custom_call.1} parent=1 // loop_exit
      _
    %575 = vsyncpa [#allocation3], 1
    %s576 = scalar_lea.sflag [#allocation3], 1
    %577 = vsyncpa %s576, 1
    %578 = vsyncpa [#allocation6], 1
    %579 = vsyncpa [#allocation4], 1
    %s580 = scalar_lea.sflag [#allocation4], 1
    %581 = vsyncpa %s580, 1
    %582 = vsyncpa [#allocation9], 1
    %s583 = scalar_lea.sflag [#allocation9], 1
    %584 = vsyncpa %s583, 1

</llo_original>
